<compile_context>
chip_gen: v7x
topology: tpu7x:2x2x1
jax: 0.10.0
libtpu: 0.0.40
codegen_flags: <defaults>
</compile_context>

<pallas_src>
import jax
import jax.numpy as jnp
from jax.experimental import pallas as pl
from jax.experimental.pallas import tpu as pltpu

# ----------------------------- config (small, aligned) -----------------------
BATCH = 8              # multiple of 8  -> full f32 sublanes
EMBEDDING_DIM = 256    # multiple of 128 -> lane-dense loads
PROJECTION_DIM = 128   # multiple of 128 -> lane-dense (unmasked) output stores
LN_EPS = 1e-5          # nn.LayerNorm default


def _gelu(x):
    # TODO(synk): PyTorch nn.GELU() default is the exact erf form; tanh approx
    # is used here for guaranteed Mosaic lowering (max abs diff ~1e-3).
    return jax.nn.gelu(x, approximate=True)


# ----------------------------- Pallas kernel ---------------------------------
def projection_head_kernel(x_ref, w1_ref, b1_ref, w2_ref, b2_ref,
                           gamma_ref, beta_ref, out_ref):
    """ProjectionHead forward, fully fused.

    x: [B, E], w1: [E, P], b1: [1, P], w2: [P, P], b2: [1, P],
    gamma/beta: [1, P]  ->  out: [B, P]
    """
    x = x_ref[...]

    # projected = self.projection(x)
    projected = jnp.dot(x, w1_ref[...],
                        preferred_element_type=jnp.float32) + b1_ref[...]

    # x = self.gelu(projected)
    h = _gelu(projected)

    # x = self.fc(x)
    h = jnp.dot(h, w2_ref[...],
                preferred_element_type=jnp.float32) + b2_ref[...]

    # x = self.dropout(x)  -- inference-mode identity (deterministic forward).
    # x = x + projected
    h = h + projected

    # x = self.layer_norm(x)
    mu = jnp.mean(h, axis=-1, keepdims=True)
    var = jnp.mean((h - mu) ** 2, axis=-1, keepdims=True)
    out_ref[...] = ((h - mu) * jax.lax.rsqrt(var + LN_EPS)) * gamma_ref[...] \
                   + beta_ref[...]


# ----------------------------- wrapper ---------------------------------------
_VMEM_SPEC = pl.BlockSpec(memory_space=pltpu.MemorySpace.VMEM)


def projection_head(params, x):
    B = x.shape[0]
    return pl.pallas_call(
        projection_head_kernel,
        out_shape=jax.ShapeDtypeStruct((B, PROJECTION_DIM), jnp.float32),
        in_specs=[_VMEM_SPEC] * 7,
        out_specs=_VMEM_SPEC,
    )(x, params["w1"], params["b1"], params["w2"], params["b2"],
      params["gamma"], params["beta"])


# ----------------------------- pure-JAX reference ----------------------------
def projection_head_ref(params, x):
    projected = x @ params["w1"] + params["b1"]
    h = _gelu(projected)
    h = h @ params["w2"] + params["b2"]
    h = h + projected
    mu = jnp.mean(h, axis=-1, keepdims=True)
    var = jnp.mean((h - mu) ** 2, axis=-1, keepdims=True)
    return (h - mu) * jax.lax.rsqrt(var + LN_EPS) * params["gamma"] + params["beta"]


# ----------------------------- deterministic params --------------------------
def make_projection_head_params(key, embedding_dim, projection_dim):
    k1, k2, k3, k4 = jax.random.split(key, 4)
    s1 = 1.0 / jnp.sqrt(embedding_dim)
    s2 = 1.0 / jnp.sqrt(projection_dim)
    return {
        "w1": jax.random.normal(k1, (embedding_dim, projection_dim), jnp.float32) * s1,
        "b1": jax.random.normal(k3, (1, projection_dim), jnp.float32) * s1,
        "w2": jax.random.normal(k2, (projection_dim, projection_dim), jnp.float32) * s2,
        "b2": jax.random.normal(k4, (1, projection_dim), jnp.float32) * s2,
        "gamma": jnp.ones((1, projection_dim), jnp.float32),
        "beta": jnp.zeros((1, projection_dim), jnp.float32),
    }


# ----------------------------- main -------------------------------------------
if __name__ == "__main__":
    key = jax.random.PRNGKey(0)
    k_params, k_x = jax.random.split(key)

    params = make_projection_head_params(k_params, EMBEDDING_DIM, PROJECTION_DIM)
    x = jax.random.normal(k_x, (BATCH, EMBEDDING_DIM), jnp.float32)

    out = projection_head(params, x)
    jax.block_until_ready(out)

    ref = projection_head_ref(params, x)
    assert out.shape == (BATCH, PROJECTION_DIM)
    assert bool(jnp.all(jnp.isfinite(out)))
    assert bool(jnp.allclose(out, ref, atol=1e-4, rtol=1e-4))
    print("KERNEL_OK")
</pallas_src>

<mosaic_0001>
module attributes {stable_mosaic.version = 11 : i64} {
  func.func @projection_head_kernel(%arg0: memref<8x256xf32, #tpu.memory_space<vmem>>, %arg1: memref<256x128xf32, #tpu.memory_space<vmem>>, %arg2: memref<1x128xf32, #tpu.memory_space<vmem>>, %arg3: memref<128x128xf32, #tpu.memory_space<vmem>>, %arg4: memref<1x128xf32, #tpu.memory_space<vmem>>, %arg5: memref<1x128xf32, #tpu.memory_space<vmem>>, %arg6: memref<1x128xf32, #tpu.memory_space<vmem>>, %arg7: memref<8x128xf32, #tpu.memory_space<vmem>>) attributes {dimension_semantics = [], scalar_prefetch = 0 : i64, scratch_operands = 0 : i64, tpu.core_type = #tpu.core_type<tc>} {
    %c0 = arith.constant 0 : index
    %c0_0 = arith.constant 0 : index
    %0 = vector.load %arg0[%c0, %c0_0] : memref<8x256xf32, #tpu.memory_space<vmem>>, vector<8x256xf32>
    %c0_1 = arith.constant 0 : index
    %c0_2 = arith.constant 0 : index
    %1 = vector.load %arg1[%c0_1, %c0_2] : memref<256x128xf32, #tpu.memory_space<vmem>>, vector<256x128xf32>
    %cst = arith.constant dense<0.000000e+00> : vector<8x128xf32>
    %2 = tpu.matmul %0, %1, %cst {dimension_numbers = #tpu.dot_dimension_numbers<[1], [0], [0], [1], [0, 0, 1, 1], [], []>} : vector<8x256xf32>, vector<256x128xf32>, vector<8x128xf32> -> vector<8x128xf32>
    %c0_3 = arith.constant 0 : index
    %c0_4 = arith.constant 0 : index
    %3 = vector.load %arg2[%c0_3, %c0_4] : memref<1x128xf32, #tpu.memory_space<vmem>>, vector<1x128xf32>
    %4 = vector.broadcast %3 : vector<1x128xf32> to vector<8x128xf32>
    %5 = arith.addf %2, %4 : vector<8x128xf32>
    %6 = arith.mulf %5, %5 : vector<8x128xf32>
    %7 = arith.mulf %5, %6 : vector<8x128xf32>
    %cst_5 = arith.constant 4.471500e-02 : f32
    %8 = vector.broadcast %cst_5 : f32 to vector<8x128xf32>
    %9 = arith.mulf %8, %7 : vector<8x128xf32>
    %10 = arith.addf %5, %9 : vector<8x128xf32>
    %cst_6 = arith.constant 0.797884583 : f32
    %11 = vector.broadcast %cst_6 : f32 to vector<8x128xf32>
    %12 = arith.mulf %11, %10 : vector<8x128xf32>
    %13 = math.tanh %12 : vector<8x128xf32>
    %cst_7 = arith.constant 1.000000e+00 : f32
    %14 = vector.broadcast %cst_7 : f32 to vector<8x128xf32>
    %15 = arith.addf %14, %13 : vector<8x128xf32>
    %cst_8 = arith.constant 5.000000e-01 : f32
    %16 = vector.broadcast %cst_8 : f32 to vector<8x128xf32>
    %17 = arith.mulf %16, %15 : vector<8x128xf32>
    %18 = arith.mulf %5, %17 : vector<8x128xf32>
    %c0_9 = arith.constant 0 : index
    %c0_10 = arith.constant 0 : index
    %19 = vector.load %arg3[%c0_9, %c0_10] : memref<128x128xf32, #tpu.memory_space<vmem>>, vector<128x128xf32>
    %cst_11 = arith.constant dense<0.000000e+00> : vector<8x128xf32>
    %20 = tpu.matmul %18, %19, %cst_11 {dimension_numbers = #tpu.dot_dimension_numbers<[1], [0], [0], [1], [0, 0, 1, 1], [], []>} : vector<8x128xf32>, vector<128x128xf32>, vector<8x128xf32> -> vector<8x128xf32>
    %c0_12 = arith.constant 0 : index
    %c0_13 = arith.constant 0 : index
    %21 = vector.load %arg4[%c0_12, %c0_13] : memref<1x128xf32, #tpu.memory_space<vmem>>, vector<1x128xf32>
    %22 = vector.broadcast %21 : vector<1x128xf32> to vector<8x128xf32>
    %23 = arith.addf %20, %22 : vector<8x128xf32>
    %24 = arith.addf %23, %5 : vector<8x128xf32>
    %cst_14 = arith.constant dense<0.000000e+00> : vector<8xf32>
    %25 = vector.multi_reduction <add>, %24, %cst_14 [1] : vector<8x128xf32> to vector<8xf32>
    %26 = vector.shape_cast %25 : vector<8xf32> to vector<8x1xf32>
    %cst_15 = arith.constant 1.280000e+02 : f32
    %27 = vector.broadcast %cst_15 : f32 to vector<8x1xf32>
    %28 = arith.divf %26, %27 : vector<8x1xf32>
    %29 = vector.broadcast %28 : vector<8x1xf32> to vector<8x128xf32>
    %30 = arith.subf %24, %29 : vector<8x128xf32>
    %31 = arith.mulf %30, %30 : vector<8x128xf32>
    %cst_16 = arith.constant dense<0.000000e+00> : vector<8xf32>
    %32 = vector.multi_reduction <add>, %31, %cst_16 [1] : vector<8x128xf32> to vector<8xf32>
    %33 = vector.shape_cast %32 : vector<8xf32> to vector<8x1xf32>
    %cst_17 = arith.constant 1.280000e+02 : f32
    %34 = vector.broadcast %cst_17 : f32 to vector<8x1xf32>
    %35 = arith.divf %33, %34 : vector<8x1xf32>
    %36 = vector.broadcast %28 : vector<8x1xf32> to vector<8x128xf32>
    %37 = arith.subf %24, %36 : vector<8x128xf32>
    %cst_18 = arith.constant 9.99999974E-6 : f32
    %38 = vector.broadcast %cst_18 : f32 to vector<8x1xf32>
    %39 = arith.addf %35, %38 : vector<8x1xf32>
    %40 = math.rsqrt %39 : vector<8x1xf32>
    %41 = vector.broadcast %40 : vector<8x1xf32> to vector<8x128xf32>
    %42 = arith.mulf %37, %41 : vector<8x128xf32>
    %c0_19 = arith.constant 0 : index
    %c0_20 = arith.constant 0 : index
    %43 = vector.load %arg5[%c0_19, %c0_20] : memref<1x128xf32, #tpu.memory_space<vmem>>, vector<1x128xf32>
    %44 = vector.broadcast %43 : vector<1x128xf32> to vector<8x128xf32>
    %45 = arith.mulf %42, %44 : vector<8x128xf32>
    %c0_21 = arith.constant 0 : index
    %c0_22 = arith.constant 0 : index
    %46 = vector.load %arg6[%c0_21, %c0_22] : memref<1x128xf32, #tpu.memory_space<vmem>>, vector<1x128xf32>
    %47 = vector.broadcast %46 : vector<1x128xf32> to vector<8x128xf32>
    %48 = arith.addf %45, %47 : vector<8x128xf32>
    %c0_23 = arith.constant 0 : index
    %c0_24 = arith.constant 0 : index
    %49 = vector.load %arg7[%c0_23, %c0_24] : memref<8x128xf32, #tpu.memory_space<vmem>>, vector<8x128xf32>
    tpu.vector_store %arg7[%c0_23, %c0_24], %48 {strides = array<i32>} : memref<8x128xf32, #tpu.memory_space<vmem>>, vector<8x128xf32>,
    return
  }
}

</mosaic_0001>

<llo_original>
// kernel: tpu_custom_call.1
$region0: #{tpu_custom_call.1}
  #allocation0 [shape = 'u32[]', space=smem, size = 0x4, offset = 0x4, fixed_abs, tag = 'smem constant byte address 0x4 - core index']
  #allocation1 [shape = 'u32[144,128]{1,0:T(1,128)}', space=vmem, size = 0x12000, scoped, tag = 'internal scratch']
  %s0 = inlined_call_operand.hbm [shape: f32[8,256], index: 0, kind: input, shape index: {}]
  %s1 = inlined_call_operand.hbm [shape: f32[256,128], index: 1, kind: input, shape index: {}]
  %s2 = inlined_call_operand.vmem [shape: f32[1,128], index: 2, kind: input, shape index: {}]
  %s3 = inlined_call_operand.hbm [shape: f32[128,128], index: 3, kind: input, shape index: {}]
  %s4 = inlined_call_operand.vmem [shape: f32[1,128], index: 4, kind: input, shape index: {}]
  %s5 = inlined_call_operand.vmem [shape: f32[1,128], index: 5, kind: input, shape index: {}]
  %s6 = inlined_call_operand.vmem [shape: f32[1,128], index: 6, kind: input, shape index: {}]
  %s7 = inlined_call_operand.hbm [shape: f32[8,128], index: 7, kind: output, shape index: {}]
  %s8 = sld [smem:[#allocation0]]
  $region50: #{tpu_custom_call.1} parent=0
    _
  %s10 = ssub.s32 1, %s8
  %s11 = scalar_select 0, %s10, %s8
  $region1: #{tpu_custom_call.1} parent=0
    #allocation2 [shape = 'u8[8192]{0}', space=vmem, size = 0x2000, scoped, tag = 'input window, operand 0, single buffered']
    #allocation3 [shape = 's32[1]{0}', space=sflag, size = 0x4, scoped, tag = 'scoped memory for tpu_custom_call.1']
    #allocation4 [shape = 's32[1]{0}', space=sflag, size = 0x4, scoped, tag = 'scoped memory for tpu_custom_call.1']
    #allocation5 [shape = 'u8[131072]{0}', space=vmem, size = 0x20000, scoped, tag = 'input window, operand 1, single buffered']
    #allocation6 [shape = 's32[1]{0}', space=sflag, size = 0x4, scoped, tag = 'scoped memory for tpu_custom_call.1']
    #allocation7 [shape = 'u8[65536]{0}', space=vmem, size = 0x10000, scoped, tag = 'input window, operand 3, single buffered']
    #allocation8 [shape = 'u8[4096]{0}', space=vmem, size = 0x1000, scoped, tag = 'output window, operand 0, single buffered']
    %12 = vsyncpa [#allocation3], 0
    %13 = vsyncpa [#allocation6], 0
    %14 = vsyncpa [#allocation4], 0
    // Predicated region
    $region2: #{tpu_custom_call.1} parent=1 // pred_check
      _
    $region3: #{tpu_custom_call.1} parent=1 // pred_check_branch
      %16 = sbr.rel (0) target = $region5
    $region4: #{tpu_custom_call.1} parent=1 // pred_region
      %s18 = ssub.s32 256, 256
      %19 = vsyncadd [#allocation3], %s18
      %s21 = sshll.u32 [#allocation2], 4
      %s22 = int_to_ptr.vmem [resolvable:$true] %s21
      %24 = dma.hbm_to_vmem [thread:$0]  %s0, 256, %s22, [#allocation3]
    $region5: #{tpu_custom_call.1} parent=1 // pred_fallthru
      _
    // Predicated region
    $region6: #{tpu_custom_call.1} parent=1 // pred_check
      _
    $region7: #{tpu_custom_call.1} parent=1 // pred_check_branch
      %26 = sbr.rel (0) target = $region9
    $region8: #{tpu_custom_call.1} parent=1 // pred_region
      %s28 = ssub.s32 4096, 4096
      %29 = vsyncadd [#allocation6], %s28
      %s30 = sshll.u32 [#allocation5], 4
      %s31 = int_to_ptr.vmem [resolvable:$true] %s30
      %36 = dma.hbm_to_vmem [thread:$0]  %s1, 4096, %s31, [#allocation6], 128, 128, 8
    $region9: #{tpu_custom_call.1} parent=1 // pred_fallthru
      _
    // Predicated region
    $region10: #{tpu_custom_call.1} parent=1 // pred_check
      _
    $region11: #{tpu_custom_call.1} parent=1 // pred_check_branch
      %38 = sbr.rel (0) target = $region13
    $region12: #{tpu_custom_call.1} parent=1 // pred_region
      _
    $region13: #{tpu_custom_call.1} parent=1 // pred_fallthru
      _
    // Predicated region
    $region14: #{tpu_custom_call.1} parent=1 // pred_check
      _
    $region15: #{tpu_custom_call.1} parent=1 // pred_check_branch
      %40 = sbr.rel (0) target = $region17
    $region16: #{tpu_custom_call.1} parent=1 // pred_region
      %s42 = ssub.s32 2048, 2048
      %43 = vsyncadd [#allocation6], %s42
      %s44 = sshll.u32 [#allocation7], 4
      %s45 = int_to_ptr.vmem [resolvable:$true] %s44
      %50 = dma.hbm_to_vmem [thread:$0]  %s3, 2048, %s45, [#allocation6], 128, 128, 8
    $region17: #{tpu_custom_call.1} parent=1 // pred_fallthru
      _
    // Predicated region
    $region18: #{tpu_custom_call.1} parent=1 // pred_check
      _
    $region19: #{tpu_custom_call.1} parent=1 // pred_check_branch
      %52 = sbr.rel (0) target = $region21
    $region20: #{tpu_custom_call.1} parent=1 // pred_region
      _
    $region21: #{tpu_custom_call.1} parent=1 // pred_fallthru
      _
    // Predicated region
    $region22: #{tpu_custom_call.1} parent=1 // pred_check
      _
    $region23: #{tpu_custom_call.1} parent=1 // pred_check_branch
      %54 = sbr.rel (0) target = $region25
    $region24: #{tpu_custom_call.1} parent=1 // pred_region
      _
    $region25: #{tpu_custom_call.1} parent=1 // pred_fallthru
      _
    // Predicated region
    $region26: #{tpu_custom_call.1} parent=1 // pred_check
      _
    $region27: #{tpu_custom_call.1} parent=1 // pred_check_branch
      %56 = sbr.rel (0) target = $region29
    $region28: #{tpu_custom_call.1} parent=1 // pred_region
      _
    $region29: #{tpu_custom_call.1} parent=1 // pred_fallthru
      _
    // Predicated region
    $region30: #{tpu_custom_call.1} parent=1 // pred_check
      _
    $region31: #{tpu_custom_call.1} parent=1 // pred_check_branch
      %58 = sbr.rel (0) target = $region33
    $region32: #{tpu_custom_call.1} parent=1 // pred_region
      %59 = dma.done [#allocation3], 256
    $region33: #{tpu_custom_call.1} parent=1 // pred_fallthru
      _
    // Predicated region
    $region34: #{tpu_custom_call.1} parent=1 // pred_check
      _
    $region35: #{tpu_custom_call.1} parent=1 // pred_check_branch
      %61 = sbr.rel (0) target = $region37
    $region36: #{tpu_custom_call.1} parent=1 // pred_region
      %62 = dma.done [#allocation6], 4096
    $region37: #{tpu_custom_call.1} parent=1 // pred_fallthru
      _
    // Predicated region
    $region38: #{tpu_custom_call.1} parent=1 // pred_check
      _
    $region39: #{tpu_custom_call.1} parent=1 // pred_check_branch
      %64 = sbr.rel (0) target = $region41
    $region40: #{tpu_custom_call.1} parent=1 // pred_region
      %65 = dma.done [#allocation6], 2048
    $region41: #{tpu_custom_call.1} parent=1 // pred_fallthru
      _
    %v66 = vld [vmem:[#allocation2] sm:$0xff]
    %v67 = vld [vmem:[#allocation2 + $0x8] sm:$0xff]
    %v68 = vld [vmem:[#allocation5] sm:$0xff]
    %v69 = vld [vmem:[#allocation5 + $0x8] sm:$0xff]
    %v70 = vld [vmem:[#allocation5 + $0x10] sm:$0xff]
    %v71 = vld [vmem:[#allocation5 + $0x18] sm:$0xff]
    %v72 = vld [vmem:[#allocation5 + $0x20] sm:$0xff]
    %v73 = vld [vmem:[#allocation5 + $0x28] sm:$0xff]
    %v74 = vld [vmem:[#allocation5 + $0x30] sm:$0xff]
    %v75 = vld [vmem:[#allocation5 + $0x38] sm:$0xff]
    %v76 = vld [vmem:[#allocation5 + $0x40] sm:$0xff]
    %v77 = vld [vmem:[#allocation5 + $0x48] sm:$0xff]
    %v78 = vld [vmem:[#allocation5 + $0x50] sm:$0xff]
    %v79 = vld [vmem:[#allocation5 + $0x58] sm:$0xff]
    %v80 = vld [vmem:[#allocation5 + $0x60] sm:$0xff]
    %v81 = vld [vmem:[#allocation5 + $0x68] sm:$0xff]
    %v82 = vld [vmem:[#allocation5 + $0x70] sm:$0xff]
    %v83 = vld [vmem:[#allocation5 + $0x78] sm:$0xff]
    %v84 = vld [vmem:[#allocation5 + $0x80] sm:$0xff]
    %v85 = vld [vmem:[#allocation5 + $0x88] sm:$0xff]
    %v86 = vld [vmem:[#allocation5 + $0x90] sm:$0xff]
    %v87 = vld [vmem:[#allocation5 + $0x98] sm:$0xff]
    %v88 = vld [vmem:[#allocation5 + $0xa0] sm:$0xff]
    %v89 = vld [vmem:[#allocation5 + $0xa8] sm:$0xff]
    %v90 = vld [vmem:[#allocation5 + $0xb0] sm:$0xff]
    %v91 = vld [vmem:[#allocation5 + $0xb8] sm:$0xff]
    %v92 = vld [vmem:[#allocation5 + $0xc0] sm:$0xff]
    %v93 = vld [vmem:[#allocation5 + $0xc8] sm:$0xff]
    %v94 = vld [vmem:[#allocation5 + $0xd0] sm:$0xff]
    %v95 = vld [vmem:[#allocation5 + $0xd8] sm:$0xff]
    %v96 = vld [vmem:[#allocation5 + $0xe0] sm:$0xff]
    %v97 = vld [vmem:[#allocation5 + $0xe8] sm:$0xff]
    %v98 = vld [vmem:[#allocation5 + $0xf0] sm:$0xff]
    %v99 = vld [vmem:[#allocation5 + $0xf8] sm:$0xff]
    %v100 = vld [vmem:[%s2] sm:$0x1]
    %v102 = vlaneseq
    %v103 = vshrl.u32 %v102, 7
    %v104 = vsub.s32 0, %v103
    %v105 = vrot.slane %v100, %v104
    %107 = vmatprep.subr.mxu0 0.0
    %108 = vmatpush1.msra.mxu0 %v68
    %109 = vmatprep.subr.mxu0 0.0
    %110 = vmatpush1.msra.mxu0 %v69
    %111 = vmatprep.subr.mxu0 0.0
    %112 = vmatpush1.msra.mxu0 %v70
    %113 = vmatprep.subr.mxu0 0.0
    %114 = vmatpush1.msra.mxu0 %v71
    %115 = vmatprep.subr.mxu0 0.0
    %116 = vmatpush1.msra.mxu0 %v72
    %117 = vmatprep.subr.mxu0 0.0
    %118 = vmatpush1.msra.mxu0 %v73
    %119 = vmatprep.subr.mxu0 0.0
    %120 = vmatpush1.msra.mxu0 %v74
    %121 = vmatprep.subr.mxu0 0.0
    %122 = vmatpush1.msra.mxu0 %v75
    %123 = vmatprep.subr.mxu0 0.0
    %124 = vmatpush1.msra.mxu0 %v76
    %125 = vmatprep.subr.mxu0 0.0
    %126 = vmatpush1.msra.mxu0 %v77
    %127 = vmatprep.subr.mxu0 0.0
    %128 = vmatpush1.msra.mxu0 %v78
    %129 = vmatprep.subr.mxu0 0.0
    %130 = vmatpush1.msra.mxu0 %v79
    %131 = vmatprep.subr.mxu0 0.0
    %132 = vmatpush1.msra.mxu0 %v80
    %133 = vmatprep.subr.mxu0 0.0
    %134 = vmatpush1.msra.mxu0 %v81
    %135 = vmatprep.subr.mxu0 0.0
    %136 = vmatpush1.msra.mxu0 %v82
    %137 = vmatprep.subr.mxu0 0.0
    %138 = vmatpush1.msra.mxu0 %v83
    %139 = vmatprep.subr.mxu0 0.0
    %140 = vmatpush1.msra.mxu0 %v84
    %141 = vmatprep.subr.mxu0 0.0
    %142 = vmatpush1.msra.mxu0 %v85
    %143 = vmatprep.subr.mxu0 0.0
    %144 = vmatpush1.msra.mxu0 %v86
    %145 = vmatprep.subr.mxu0 0.0
    %146 = vmatpush1.msra.mxu0 %v87
    %147 = vmatprep.subr.mxu0 0.0
    %148 = vmatpush1.msra.mxu0 %v88
    %149 = vmatprep.subr.mxu0 0.0
    %150 = vmatpush1.msra.mxu0 %v89
    %151 = vmatprep.subr.mxu0 0.0
    %152 = vmatpush1.msra.mxu0 %v90
    %153 = vmatprep.subr.mxu0 0.0
    %154 = vmatpush1.msra.mxu0 %v91
    %155 = vmatprep.subr.mxu0 0.0
    %156 = vmatpush1.msra.mxu0 %v92
    %157 = vmatprep.subr.mxu0 0.0
    %158 = vmatpush1.msra.mxu0 %v93
    %159 = vmatprep.subr.mxu0 0.0
    %160 = vmatpush1.msra.mxu0 %v94
    %161 = vmatprep.subr.mxu0 0.0
    %162 = vmatpush1.msra.mxu0 %v95
    %163 = vmatprep.subr.mxu0 0.0
    %164 = vmatpush1.msra.mxu0 %v96
    %165 = vmatprep.subr.mxu0 0.0
    %166 = vmatpush1.msra.mxu0 %v97
    %167 = vmatprep.subr.mxu0 0.0
    %168 = vmatpush1.msra.mxu0 %v98
    %169 = vmatprep.subr.mxu0 0.0
    %170 = vmatpush1.msra.mxu0 %v99
    %171 = vmatprep.mubr.f32.mxu0 %v67
    %172 = vmatmul.mubr.f32.gmra.mrb[0].mxu0 %v66
    %v173 = vpop.f32.mrb[0].mxu0
    %v174 = vadd.f32 %v105, %v173
    %v175 = vpop.f32.mrb[0].mxu0
    %176 = vdwg.mxu0
    %v177 = vmul.f32 %v174, %v174
    %v178 = vmul.f32 %v174, %v177
    %v179 = vmul.f32 %v178, 0.044715
    %v180 = vadd.f32 %v174, %v179
    %v181 = vmul.f32 %v180, 0.7978846
    %v182 = vtanh.pop %v181
    %v183 = vadd.f32 %v182, 1.0
    %v184 = vmul.f32 %v183, 0.5
    %v185 = vmul.f32 %v174, %v184
    %v186 = vld [vmem:[#allocation7] sm:$0xff]
    %v187 = vld [vmem:[#allocation7 + $0x8] sm:$0xff]
    %v188 = vld [vmem:[#allocation7 + $0x10] sm:$0xff]
    %v189 = vld [vmem:[#allocation7 + $0x18] sm:$0xff]
    %v190 = vld [vmem:[#allocation7 + $0x20] sm:$0xff]
    %v191 = vld [vmem:[#allocation7 + $0x28] sm:$0xff]
    %v192 = vld [vmem:[#allocation7 + $0x30] sm:$0xff]
    %v193 = vld [vmem:[#allocation7 + $0x38] sm:$0xff]
    %v194 = vld [vmem:[#allocation7 + $0x40] sm:$0xff]
    %v195 = vld [vmem:[#allocation7 + $0x48] sm:$0xff]
    %v196 = vld [vmem:[#allocation7 + $0x50] sm:$0xff]
    %v197 = vld [vmem:[#allocation7 + $0x58] sm:$0xff]
    %v198 = vld [vmem:[#allocation7 + $0x60] sm:$0xff]
    %v199 = vld [vmem:[#allocation7 + $0x68] sm:$0xff]
    %v200 = vld [vmem:[#allocation7 + $0x70] sm:$0xff]
    %v201 = vld [vmem:[#allocation7 + $0x78] sm:$0xff]
    %v202 = vld [vmem:[%s4] sm:$0x1]
    %v204 = vlaneseq
    %v205 = vshrl.u32 %v204, 7
    %v206 = vsub.s32 0, %v205
    %v207 = vrot.slane %v202, %v206
    %209 = vmatprep.subr.mxu0 0.0
    %210 = vmatpush1.msra.mxu0 %v186
    %211 = vmatprep.subr.mxu0 0.0
    %212 = vmatpush1.msra.mxu0 %v187
    %213 = vmatprep.subr.mxu0 0.0
    %214 = vmatpush1.msra.mxu0 %v188
    %215 = vmatprep.subr.mxu0 0.0
    %216 = vmatpush1.msra.mxu0 %v189
    %217 = vmatprep.subr.mxu0 0.0
    %218 = vmatpush1.msra.mxu0 %v190
    %219 = vmatprep.subr.mxu0 0.0
    %220 = vmatpush1.msra.mxu0 %v191
    %221 = vmatprep.subr.mxu0 0.0
    %222 = vmatpush1.msra.mxu0 %v192
    %223 = vmatprep.subr.mxu0 0.0
    %224 = vmatpush1.msra.mxu0 %v193
    %225 = vmatprep.subr.mxu0 0.0
    %226 = vmatpush1.msra.mxu0 %v194
    %227 = vmatprep.subr.mxu0 0.0
    %228 = vmatpush1.msra.mxu0 %v195
    %229 = vmatprep.subr.mxu0 0.0
    %230 = vmatpush1.msra.mxu0 %v196
    %231 = vmatprep.subr.mxu0 0.0
    %232 = vmatpush1.msra.mxu0 %v197
    %233 = vmatprep.subr.mxu0 0.0
    %234 = vmatpush1.msra.mxu0 %v198
    %235 = vmatprep.subr.mxu0 0.0
    %236 = vmatpush1.msra.mxu0 %v199
    %237 = vmatprep.subr.mxu0 0.0
    %238 = vmatpush1.msra.mxu0 %v200
    %239 = vmatprep.subr.mxu0 0.0
    %240 = vmatpush1.msra.mxu0 %v201
    %241 = vmatprep.subr.mxu0 0.0
    %242 = vmatpush1.msra.mxu0 0.0
    %243 = vmatprep.subr.mxu0 0.0
    %244 = vmatpush1.msra.mxu0 0.0
    %245 = vmatprep.subr.mxu0 0.0
    %246 = vmatpush1.msra.mxu0 0.0
    %247 = vmatprep.subr.mxu0 0.0
    %248 = vmatpush1.msra.mxu0 0.0
    %249 = vmatprep.subr.mxu0 0.0
    %250 = vmatpush1.msra.mxu0 0.0
    %251 = vmatprep.subr.mxu0 0.0
    %252 = vmatpush1.msra.mxu0 0.0
    %253 = vmatprep.subr.mxu0 0.0
    %254 = vmatpush1.msra.mxu0 0.0
    %255 = vmatprep.subr.mxu0 0.0
    %256 = vmatpush1.msra.mxu0 0.0
    %257 = vmatprep.subr.mxu0 0.0
    %258 = vmatpush1.msra.mxu0 0.0
    %259 = vmatprep.subr.mxu0 0.0
    %260 = vmatpush1.msra.mxu0 0.0
    %261 = vmatprep.subr.mxu0 0.0
    %262 = vmatpush1.msra.mxu0 0.0
    %263 = vmatprep.subr.mxu0 0.0
    %264 = vmatpush1.msra.mxu0 0.0
    %265 = vmatprep.subr.mxu0 0.0
    %266 = vmatpush1.msra.mxu0 0.0
    %267 = vmatprep.subr.mxu0 0.0
    %268 = vmatpush1.msra.mxu0 0.0
    %269 = vmatprep.subr.mxu0 0.0
    %270 = vmatpush1.msra.mxu0 0.0
    %271 = vmatprep.subr.mxu0 0.0
    %272 = vmatpush1.msra.mxu0 0.0
    %273 = vmatprep.mubr.f32.mxu0 0.0
    %274 = vmatmul.mubr.f32.gmra.mrb[0].mxu0 %v185
    %v275 = vpop.f32.mrb[0].mxu0
    %v276 = vadd.f32 %v207, %v275
    %v277 = vpop.f32.mrb[0].mxu0
    %278 = vdwg.mxu0
    %v279 = vadd.f32 %v276, %v174
    %280 = vadd.xlane.f32.xlu0 %v279
    %v281 = vpop.xlane.xlu0 %280
    %v282 = vrcp.pop 128.0
    %v283 = vmul.f32 %v281, %v282
    %v284 = vsub.f32 %v279, %v283
    %v285 = vmul.f32 %v284, %v284
    %286 = vadd.xlane.f32.xlu0 %v285
    %v287 = vpop.xlane.xlu0 %286
    %v288 = vmul.f32 %v287, %v282
    %v289 = vadd.f32 %v288, 1e-05
    %v290 = vrsqrt.pop %v289
    %v291 = vmul.f32 %v284, %v290
    %v292 = vld [vmem:[%s5] sm:$0x1]
    %v294 = vlaneseq
    %v295 = vshrl.u32 %v294, 7
    %v296 = vsub.s32 0, %v295
    %v297 = vrot.slane %v292, %v296
    %v299 = vmul.f32 %v291, %v297
    %v300 = vld [vmem:[%s6] sm:$0x1]
    %v302 = vlaneseq
    %v303 = vshrl.u32 %v302, 7
    %v304 = vsub.s32 0, %v303
    %v305 = vrot.slane %v300, %v304
    %v307 = vadd.f32 %v299, %v305
    %308 = vst [vmem:[#allocation8] sm:$0xff] %v307
    // Predicated region
    $region42: #{tpu_custom_call.1} parent=1 // pred_check
      _
    $region43: #{tpu_custom_call.1} parent=1 // pred_check_branch
      %310 = sbr.rel (0) target = $region45
    $region44: #{tpu_custom_call.1} parent=1 // pred_region
      %s312 = ssub.s32 128, 128
      %313 = vsyncadd [#allocation4], %s312
      %s315 = sshll.u32 [#allocation8], 4
      %s316 = int_to_ptr.vmem [resolvable:$true] %s315
      %318 = dma.vmem_to_hbm [thread:$0]  %s316, 128, %s7, [#allocation4]
    $region45: #{tpu_custom_call.1} parent=1 // pred_fallthru
      _
    // Predicated region
    $region46: #{tpu_custom_call.1} parent=1 // pred_check
      _
    $region47: #{tpu_custom_call.1} parent=1 // pred_check_branch
      %320 = sbr.rel (0) target = $region49
    $region48: #{tpu_custom_call.1} parent=1 // pred_region
      %321 = dma.done [#allocation4], 128
    $region49: #{tpu_custom_call.1} parent=1 // pred_fallthru
      _
    %322 = vsyncpa [#allocation3], 1
    %323 = vsyncpa [#allocation6], 1
    %324 = vsyncpa [#allocation4], 1

</llo_original>
